<compile_context>
chip_gen: v6e
topology: v6e:2x2x1
jax: 0.10.0
libtpu: 0.0.40
codegen_flags: <defaults>
</compile_context>

<pallas_src>
import functools

import jax
import jax.numpy as jnp
from jax.experimental import pallas as pl
from jax.experimental.pallas import tpu as pltpu

_COLS = 1024          # lane-dense last dim (multiple of 128)
_SUB = 8              # f32 sublane granularity
_SMALL_M_MAX = 4096   # <= this: single full-array block, no pad / no slice


def _round_up(n, m):
    return ((n + m - 1) // m) * m


def _device_generation():
    try:
        kind = jax.devices()[0].device_kind.lower()
    except Exception:
        return 0
    for g in (7, 6, 5):
        if ("v%d" % g) in kind:
            return g
    return 0


_GEN = _device_generation()
if _GEN in (5, 6):
    # 128 MiB physical VMEM: bigger blocks amortize per-step overhead.
    _SCALAR_BLOCK_ROWS = 2048       # 2 slabs x 2 bufs x 8 MiB = 32 MiB
    _VECTOR_BLOCK_ROWS = 1024       # 3 slabs x 2 bufs x 4 MiB = 24 MiB
    _VMEM_LIMIT = 64 * 1024 * 1024
else:
    # v7x (64 MiB VMEM) or unknown: stay within the 32 MiB scoped default.
    _SCALAR_BLOCK_ROWS = 1024       # 2 x 2 x 4 MiB = 16 MiB
    _VECTOR_BLOCK_ROWS = 1024       # 3 x 2 x 4 MiB = 24 MiB
    _VMEM_LIMIT = 32 * 1024 * 1024


# --------------------------------------------------------------------------
# Kernels
# --------------------------------------------------------------------------
def _rbf_scalar_kernel(scal_ref, s_ref, o_ref):
    # scal_ref: SMEM (2,) = [broadcast scalar a, -gamma]
    # s_ref / o_ref: streamed operand / output tiles
    a = scal_ref[0]
    ng = scal_ref[1]
    d = s_ref[...] - a                    # (s - a)^2 == (a - s)^2
    o_ref[...] = jnp.exp(ng * (d * d))


def _rbf_vec_kernel(ng_ref, x_ref, c_ref, o_ref):
    # ng_ref: SMEM (1,) = [-gamma]
    ng = ng_ref[0]
    d = x_ref[...] - c_ref[...]
    o_ref[...] = jnp.exp(ng * (d * d))


# --------------------------------------------------------------------------
# Slab helpers and pallas_call builders
# --------------------------------------------------------------------------
def _slab_rows(m):
    return _round_up(max(1, pl.cdiv(m, _COLS)), _SUB)


def _make_slab(flat, rows_p):
    pad = rows_p * _COLS - flat.shape[0]
    return jnp.pad(flat, (0, pad)).reshape(rows_p, _COLS)


def _scalar_pallas(scal, slab, block_rows):
    rows_p, cols = slab.shape
    br = min(block_rows, rows_p)              # never a block bigger than the array
    grid = (pl.cdiv(rows_p, br),)             # ragged last block -> masked writeback
    blk = pl.BlockSpec((br, cols), lambda i: (i, 0))
    return pl.pallas_call(
        _rbf_scalar_kernel,
        out_shape=jax.ShapeDtypeStruct((rows_p, cols), slab.dtype),
        grid=grid,
        in_specs=[pl.BlockSpec(memory_space=pltpu.SMEM), blk],
        out_specs=blk,
        compiler_params=pltpu.CompilerParams(
            dimension_semantics=("parallel",),
            vmem_limit_bytes=_VMEM_LIMIT,
        ),
    )(scal, slab)


def _vec_pallas(ng, x_slab, c_slab, block_rows):
    rows_p, cols = x_slab.shape
    br = min(block_rows, rows_p)
    grid = (pl.cdiv(rows_p, br),)
    blk = pl.BlockSpec((br, cols), lambda i: (i, 0))
    return pl.pallas_call(
        _rbf_vec_kernel,
        out_shape=jax.ShapeDtypeStruct((rows_p, cols), x_slab.dtype),
        grid=grid,
        in_specs=[pl.BlockSpec(memory_space=pltpu.SMEM), blk, blk],
        out_specs=blk,
        compiler_params=pltpu.CompilerParams(
            dimension_semantics=("parallel",),
            vmem_limit_bytes=_VMEM_LIMIT,
        ),
    )(ng, x_slab, c_slab)


# --------------------------------------------------------------------------
# Jitted per-path wrappers
# --------------------------------------------------------------------------
@jax.jit
def _scalar_small(scal, stream):
    # stream: (1, M), M small -> single whole-array block, no grid.
    return pl.pallas_call(
        _rbf_scalar_kernel,
        out_shape=jax.ShapeDtypeStruct(stream.shape, stream.dtype),
        in_specs=[pl.BlockSpec(memory_space=pltpu.SMEM),
                  pl.BlockSpec(memory_space=pltpu.VMEM)],
        out_specs=pl.BlockSpec(memory_space=pltpu.VMEM),
        compiler_params=pltpu.CompilerParams(vmem_limit_bytes=_VMEM_LIMIT),
    )(scal, stream)


@jax.jit
def _vec_small(ng, x2, c2):
    return pl.pallas_call(
        _rbf_vec_kernel,
        out_shape=jax.ShapeDtypeStruct(x2.shape, x2.dtype),
        in_specs=[pl.BlockSpec(memory_space=pltpu.SMEM),
                  pl.BlockSpec(memory_space=pltpu.VMEM),
                  pl.BlockSpec(memory_space=pltpu.VMEM)],
        out_specs=pl.BlockSpec(memory_space=pltpu.VMEM),
        compiler_params=pltpu.CompilerParams(vmem_limit_bytes=_VMEM_LIMIT),
    )(ng, x2, c2)


@functools.partial(jax.jit, static_argnames=("m", "block_rows"))
def _scalar_slab_path(scal, slab, m, block_rows):
    # Slab is precomputed (cached centers); only slice if there is real padding.
    out = _scalar_pallas(scal, slab, block_rows)
    if out.size == m:
        return out.reshape(1, m)
    return out.reshape(-1)[:m].reshape(1, m)


@functools.partial(jax.jit, static_argnames=("block_rows",))
def _scalar_flat_path(scal, flat, block_rows):
    # Per-call operand (x) streamed against a scalar center.
    m = flat.shape[0]
    slab = _make_slab(flat, _slab_rows(m))
    out = _scalar_pallas(scal, slab, block_rows)
    if out.size == m:
        return out.reshape(1, m)
    return out.reshape(-1)[:m].reshape(1, m)


@functools.partial(jax.jit, static_argnames=("m", "block_rows"))
def _vec_slab_path(ng, x_flat, c_slab, m, block_rows):
    x_slab = _make_slab(x_flat, c_slab.shape[0])
    out = _vec_pallas(ng, x_slab, c_slab, block_rows)
    if out.size == m:
        return out.reshape(1, m)
    return out.reshape(-1)[:m].reshape(1, m)


# --------------------------------------------------------------------------
# Module wrapper (mirrors the PyTorch nn.Module)
# --------------------------------------------------------------------------
class RBF:
    """JAX/Pallas port of the PyTorch RBF module."""

    def __init__(self, centers, gamma, dtype=jnp.float32):
        c = jnp.reshape(jnp.asarray(centers, dtype=dtype), (1, -1)).astype(jnp.float32)
        self.centers = c
        self.nc = int(c.shape[1])
        self.neg_gamma = -jnp.asarray(gamma, dtype=jnp.float32)
        # centers is a fixed parameter: precompute its lane-dense padded slab
        # once so the hot scalar-x path pays no per-call pad pass.
        if self.nc > _SMALL_M_MAX:
            self._centers_slab = _make_slab(c.reshape(-1), _slab_rows(self.nc))
        else:
            self._centers_slab = None

    def __call__(self, x, block_rows=None):
        return self.forward(x, block_rows=block_rows)

    def forward(self, x, block_rows=None):
        x2 = jnp.reshape(jnp.asarray(x, jnp.float32), (1, -1))
        nx = int(x2.shape[1])
        nc = self.nc

        if nx == 1:
            # Typical path: a single scalar distance expanded onto the centers.
            scal = jnp.stack([x2.reshape(()), self.neg_gamma])
            if nc <= _SMALL_M_MAX:
                return _scalar_small(scal, self.centers)
            br = block_rows if block_rows is not None else _SCALAR_BLOCK_ROWS
            return _scalar_slab_path(scal, self._centers_slab, m=nc, block_rows=br)

        if nc == 1:
            # Scalar center broadcast onto x.
            scal = jnp.stack([self.centers.reshape(()), self.neg_gamma])
            if nx <= _SMALL_M_MAX:
                return _scalar_small(scal, x2)
            br = block_rows if block_rows is not None else _SCALAR_BLOCK_ROWS
            return _scalar_flat_path(scal, x2.reshape(-1), block_rows=br)

        # Elementwise path (torch broadcasting requires nx == nc here).
        if nx != nc:
            raise ValueError(f"Cannot broadcast x ({nx}) against centers ({nc}).")
        ng = self.neg_gamma.reshape(1)
        if nc <= _SMALL_M_MAX:
            return _vec_small(ng, x2, self.centers)
        br = block_rows if block_rows is not None else _VECTOR_BLOCK_ROWS
        return _vec_slab_path(ng, x2.reshape(-1), self._centers_slab, m=nc, block_rows=br)


def _reference(x, centers, gamma):
    x2 = jnp.reshape(jnp.asarray(x, jnp.float32), (1, -1))
    c2 = jnp.reshape(jnp.asarray(centers, jnp.float32), (1, -1))
    return jnp.exp(-jnp.float32(gamma) * jnp.square(x2 - c2))


if __name__ == "__main__":
    key = jax.random.PRNGKey(0)
    k1, k2, k3 = jax.random.split(key, 3)

    num_centers = 64
    centers = jnp.linspace(0.0, 8.0, num_centers, dtype=jnp.float32)
    gamma = 0.5
    rbf = RBF(centers, gamma)

    # 1) Typical usage: scalar x expanded onto the RBF centers
    #    (SMEM scalar fast path, single full-array block, no pad/slice).
    x_scalar = jax.random.uniform(k1, (1, 1), dtype=jnp.float32) * 8.0
    out1 = jax.block_until_ready(rbf(x_scalar))
    ref1 = _reference(x_scalar, centers, gamma)
    assert out1.shape == (1, num_centers)
    assert jnp.allclose(out1, ref1, atol=1e-6, rtol=1e-6)

    # 2) Degenerate broadcast: x.numel() == num_centers (elementwise small path).
    x_vec = jax.random.uniform(k2, (2, 4, 8), dtype=jnp.float32) * 8.0
    out2 = jax.block_until_ready(rbf(x_vec))
    ref2 = _reference(x_vec, centers, gamma)
    assert out2.shape == (1, num_centers)
    assert jnp.allclose(out2, ref2, atol=1e-6, rtol=1e-6)

    # 3) Scalar center broadcast onto a small x vector.
    rbf_c1 = RBF([2.5], gamma)
    x_small = jax.random.uniform(k3, (4, 16), dtype=jnp.float32) * 8.0
    out3 = jax.block_until_ready(rbf_c1(x_small))
    ref3 = _reference(x_small, jnp.asarray([2.5], jnp.float32), gamma)
    assert out3.shape == (1, 64)
    assert jnp.allclose(out3, ref3, atol=1e-6, rtol=1e-6)

    # 4) Large-M slab path with cached padded centers.  First default blocks
    #    (single clamped block), then a small block override so the multi-block
    #    grid + ragged last block + output slice path is exercised (M just past
    #    a block boundary, per the correctness-review request).
    big_n = 70_000
    big_centers = jnp.linspace(0.0, 8.0, big_n, dtype=jnp.float32)
    rbf_big = RBF(big_centers, gamma)
    ref4 = _reference(x_scalar, big_centers, gamma)

    out4 = jax.block_until_ready(rbf_big(x_scalar))                  # grid=(1,)
    assert out4.shape == (1, big_n)
    assert jnp.allclose(out4, ref4, atol=1e-6, rtol=1e-6)

    out5 = jax.block_until_ready(rbf_big(x_scalar, block_rows=32))   # grid=(3,), ragged
    assert out5.shape == (1, big_n)
    assert jnp.allclose(out5, ref4, atol=1e-6, rtol=1e-6)

    # 5) Large elementwise path (x padded per call, centers slab cached).
    x_big = jax.random.uniform(k1, (big_n,), dtype=jnp.float32) * 8.0
    out6 = jax.block_until_ready(rbf_big(x_big, block_rows=32))
    ref6 = _reference(x_big, big_centers, gamma)
    assert out6.shape == (1, big_n)
    assert jnp.allclose(out6, ref6, atol=1e-6, rtol=1e-6)

    print("KERNEL_OK")
</pallas_src>

<mosaic_0001>
module attributes {stable_mosaic.version = 11 : i64} {
  func.func @_rbf_scalar_kernel(%arg0: memref<2xf32, #tpu.memory_space<smem>>, %arg1: memref<1x64xf32, #tpu.memory_space<vmem>>, %arg2: memref<1x64xf32, #tpu.memory_space<vmem>>) attributes {dimension_semantics = [], scalar_prefetch = 0 : i64, scratch_operands = 0 : i64, tpu.core_type = #tpu.core_type<tc>} {
    %c0 = arith.constant 0 : index
    %0 = memref.load %arg0[%c0] : memref<2xf32, #tpu.memory_space<smem>>
    %c1 = arith.constant 1 : index
    %1 = memref.load %arg0[%c1] : memref<2xf32, #tpu.memory_space<smem>>
    %c0_0 = arith.constant 0 : index
    %c0_1 = arith.constant 0 : index
    %2 = vector.load %arg1[%c0_0, %c0_1] : memref<1x64xf32, #tpu.memory_space<vmem>>, vector<1x64xf32>
    %3 = vector.broadcast %0 : f32 to vector<1x64xf32>
    %4 = arith.subf %2, %3 : vector<1x64xf32>
    %5 = arith.mulf %4, %4 : vector<1x64xf32>
    %6 = vector.broadcast %1 : f32 to vector<1x64xf32>
    %7 = arith.mulf %6, %5 : vector<1x64xf32>
    %8 = math.exp %7 : vector<1x64xf32>
    %c0_2 = arith.constant 0 : index
    %c0_3 = arith.constant 0 : index
    %9 = vector.load %arg2[%c0_2, %c0_3] : memref<1x64xf32, #tpu.memory_space<vmem>>, vector<1x64xf32>
    tpu.vector_store %arg2[%c0_2, %c0_3], %8 {strides = array<i32>} : memref<1x64xf32, #tpu.memory_space<vmem>>, vector<1x64xf32>,
    return
  }
}

</mosaic_0001>

<llo_original>
// kernel: _scalar_small.1
$region0: #{_scalar_small.1}
  #allocation0 [shape = 'u32[]', space=smem, size = 0x4, offset = 0x4, fixed_abs, tag = 'smem constant byte address 0x4 - core index']
  #allocation1 [shape = 'u32[144,128]{1,0:T(1,128)}', space=vmem, size = 0x12000, scoped, tag = 'internal scratch']
  %s0 = inlined_call_operand.hbm [shape: f32[2], index: 0, kind: input, shape index: {}]
  %s1 = inlined_call_operand.vmem [shape: f32[1,64], index: 1, kind: input, shape index: {}]
  %s2 = inlined_call_operand.hbm [shape: f32[1,64], index: 2, kind: output, shape index: {}]
  %s3 = sld [smem:[#allocation0]]
  $region22: #{_scalar_small.1} parent=0
    _
  %s5 = ssub.s32 1, %s3
  %s6 = scalar_select 0, %s5, %s3
  $region1: #{_scalar_small.1} parent=0
    #allocation2 [shape = 'u8[512]{0}', space=smem, size = 0x200, scoped, tag = 'input window, operand 0, single buffered']
    #allocation3 [shape = 's32[1]{0}', space=sflag, size = 0x4, scoped, tag = 'scoped memory for _scalar_small.1']
    #allocation4 [shape = 's32[1]{0}', space=sflag, size = 0x4, scoped, tag = 'scoped memory for _scalar_small.1']
    #allocation5 [shape = 'u8[512]{0}', space=vmem, size = 0x400, scoped, tag = 'output window, operand 0, single buffered']
    %7 = vsyncpa [#allocation4], 0
    %8 = vsyncpa [#allocation3], 0
    // Predicated region
    $region2: #{_scalar_small.1} parent=1 // pred_check
      _
    $region3: #{_scalar_small.1} parent=1 // pred_check_branch
      %10 = sbr.rel (0) target = $region5
    $region4: #{_scalar_small.1} parent=1 // pred_region
      %s12 = ssub.s32 16, 16
      %13 = vsyncadd [#allocation4], %s12
      %16 = dma.hbm_to_smem %s0, 16, [#allocation2], [#allocation4]
    $region5: #{_scalar_small.1} parent=1 // pred_fallthru
      _
    // Predicated region
    $region6: #{_scalar_small.1} parent=1 // pred_check
      _
    $region7: #{_scalar_small.1} parent=1 // pred_check_branch
      %18 = sbr.rel (0) target = $region9
    $region8: #{_scalar_small.1} parent=1 // pred_region
      _
    $region9: #{_scalar_small.1} parent=1 // pred_fallthru
      _
    // Predicated region
    $region10: #{_scalar_small.1} parent=1 // pred_check
      _
    $region11: #{_scalar_small.1} parent=1 // pred_check_branch
      %20 = sbr.rel (0) target = $region13
    $region12: #{_scalar_small.1} parent=1 // pred_region
      %21 = dma.done [#allocation4], 16
    $region13: #{_scalar_small.1} parent=1 // pred_fallthru
      _
    %22 = sfence
    %s23 = sld [smem:[#allocation2]]
    %s24 = sld [smem:[#allocation2 + $0x1]]
    %v25 = vld [vmem:[%s1] sm:$0x1]
    %v26 = vstv %s23
    %v27 = vsub.f32 %v25, %v26
    %v28 = vmul.f32 %v27, %v27
    %v29 = vstv %s24
    %v30 = vmul.f32 %v29, %v28
    %v31 = vmul.f32 %v30, 1.442695
    %v32 = vpow.pop %v31
    %vm33 = vcmask 516096
    %34 = vst.msk [vmem:[#allocation5] sm:$0x1] %vm33, %v32
    // Predicated region
    $region14: #{_scalar_small.1} parent=1 // pred_check
      _
    $region15: #{_scalar_small.1} parent=1 // pred_check_branch
      %36 = sbr.rel (0) target = $region17
    $region16: #{_scalar_small.1} parent=1 // pred_region
      %s38 = ssub.s32 16, 16
      %39 = vsyncadd [#allocation3], %s38
      %s41 = sshll.u32 [#allocation5], 4
      %s42 = int_to_ptr.vmem [resolvable:$true] %s41
      %44 = dma.vmem_to_hbm [thread:$0]  %s42, 16, %s2, [#allocation3]
    $region17: #{_scalar_small.1} parent=1 // pred_fallthru
      _
    // Predicated region
    $region18: #{_scalar_small.1} parent=1 // pred_check
      _
    $region19: #{_scalar_small.1} parent=1 // pred_check_branch
      %46 = sbr.rel (0) target = $region21
    $region20: #{_scalar_small.1} parent=1 // pred_region
      %47 = dma.done [#allocation3], 16
    $region21: #{_scalar_small.1} parent=1 // pred_fallthru
      _
    %48 = vsyncpa [#allocation3], 1
    %49 = vsyncpa [#allocation4], 1

</llo_original>
